<compile_context>
chip_gen: v6e
topology: v6e:2x2x1
jax: 0.10.0
libtpu: 0.0.40
codegen_flags: <defaults>
</compile_context>

<pallas_src>
import jax
import jax.numpy as jnp
from jax.experimental import pallas as pl
from jax.experimental.pallas import tpu as pltpu


def _make_dino_kernel(ncrops, tile_b, D, teacher_temp_value, student_temp,
                      inv_bn):
    assert ncrops >= 2, "DINO loss requires ncrops >= 2 (n_loss_terms > 0)"
    inv_temp = 1.0 / float(teacher_temp_value)
    inv_student_temp = 1.0 / float(student_temp)

    def kernel(student_ref, teacher_ref, center_ref, loss_ref, csum_ref):
        i = pl.program_id(1)

        @pl.when(i == 0)
        def _init():
            loss_ref[...] = jnp.zeros_like(loss_ref)
            csum_ref[...] = jnp.zeros_like(csum_ref)

        center = center_ref[...].astype(jnp.float32)            # (1, D)
        t = teacher_ref[...].astype(jnp.float32)                # (2, tB, D)
        s = student_ref[...].astype(jnp.float32)                # (ncrops, tB, D)

        # Teacher softmax over the feature dim, both chunks at once.
        t_logits = (t - center[None, :, :]) * inv_temp
        t_max = jnp.max(t_logits, axis=-1, keepdims=True)
        t_exp = jnp.exp(t_logits - t_max)
        t_den = jnp.sum(t_exp, axis=-1, keepdims=True)          # (2, tB, 1)
        q = t_exp * pl.reciprocal(t_den)                        # exact

        # Student log-sum-exp per (crop, row); log_p is never materialized.
        s_max = jnp.max(s, axis=-1, keepdims=True) * inv_student_temp
        s_exp = jnp.exp(s * inv_student_temp - s_max)
        s_lse = jnp.log(jnp.sum(s_exp, axis=-1, keepdims=True)) + s_max  # (ncrops,tB,1)

        # sum_{iq} sum_{v!=iq} -q[iq]·log_p[v]
        #   = inv_st * ( sum_D(q0*s0+q1*s1) - sum_D(q_sum*s_sum) )
        #     + 2*sum_v lse[v] - (lse[0]+lse[1])          (softmax rows sum to 1)
        q_sum = q[0] + q[1]                                     # (tB, D)
        s_sum = jnp.sum(s, axis=0)                              # (tB, D)
        lse_all = jnp.sum(s_lse, axis=0)                        # (tB, 1)
        lse_diag = s_lse[0] + s_lse[1]                          # (tB, 1)

        m = q[0] * s[0] + q[1] * s[1] - q_sum * s_sum           # (tB, D)
        ones_d = jnp.ones((D, 1), jnp.float32)
        dot_rows = jnp.dot(m, ones_d,
                           preferred_element_type=jnp.float32)  # MXU D-reduce
        row_loss = inv_student_temp * dot_rows + 2.0 * lse_all - lse_diag  # (tB,1)
        blk_loss = jnp.sum(row_loss, axis=0, keepdims=True) * inv_bn       # (1,1)
        loss_ref[...] += blk_loss[None]                         # (1,1,1)

        # Partial teacher-row sums for the EMA center (raw logits).
        ones_rows = jnp.ones((1, tile_b), jnp.float32)
        t_rows = t[0] + t[1]                                    # (tB, D)
        csum_ref[...] += jnp.dot(ones_rows, t_rows,
                                 preferred_element_type=jnp.float32)[None]

    return kernel


def _choose_tile_b(B, D, ncrops, itemsize, budget_bytes=12 << 20):
    # Sublane quantum: 8 rows for 4-byte, 16 for 2-byte, 32 for 1-byte dtypes.
    quantum = {4: 8, 2: 16, 1: 32}.get(itemsize, 8)
    # Rough per-row bytes: double-buffered native inputs + ~3 f32 working copies.
    bytes_per_row = (ncrops + 2) * D * (2 * itemsize + 3 * 4)
    best = None
    cand = quantum
    while cand <= B:
        if B % cand == 0 and cand * bytes_per_row <= budget_bytes:
            best = cand
        cand += quantum
    if best is None:
        best = B  # block_shape == full dim is always layout-legal
    return best


def dino_loss_pallas(student_output, teacher_output, center, temp, *,
                     ncrops, student_temp=0.1, center_momentum=0.9,
                     tile_b=None):
    """Returns (total_loss scalar, new_center (1, D))."""
    total_teacher_rows, D = teacher_output.shape
    B = total_teacher_rows // 2
    assert teacher_output.shape == (2 * B, D)
    assert student_output.shape == (ncrops * B, D)
    assert center.shape == (1, D)
    assert ncrops >= 2

    # Keep native dtype; the kernel upcasts to f32 after the load.
    student = student_output.reshape(ncrops, B, D)
    teacher = teacher_output.reshape(2, B, D)

    itemsize = jnp.dtype(student_output.dtype).itemsize
    if tile_b is None:
        tile_b = _choose_tile_b(B, D, ncrops, itemsize)
    assert B % tile_b == 0
    n_row_blocks = B // tile_b
    # Megacore (v7x): shard the outer grid axis across TensorCores with
    # per-split partial outputs, combined by a trivial add in the wrapper.
    n_split = 2 if (n_row_blocks >= 2 and n_row_blocks % 2 == 0) else 1
    nblk = n_row_blocks // n_split

    n_loss_terms = 2 * (ncrops - 1)
    inv_bn = 1.0 / float(B * n_loss_terms)

    kernel = _make_dino_kernel(ncrops, tile_b, D, float(temp), student_temp,
                               inv_bn)

    def row_map(c, i):
        return (0, c * nblk + i, 0)

    loss_partial, center_partial = pl.pallas_call(
        kernel,
        grid=(n_split, nblk),
        in_specs=[
            pl.BlockSpec((ncrops, tile_b, D), row_map),      # student
            pl.BlockSpec((2, tile_b, D), row_map),           # teacher
            pl.BlockSpec((1, D), lambda c, i: (0, 0)),       # center (resident)
        ],
        out_specs=[
            pl.BlockSpec((1, 1, 1), lambda c, i: (c, 0, 0)),   # loss partials
            pl.BlockSpec((1, 1, D), lambda c, i: (c, 0, 0)),   # teacher row sums
        ],
        out_shape=[
            jax.ShapeDtypeStruct((n_split, 1, 1), jnp.float32),
            jax.ShapeDtypeStruct((n_split, 1, D), jnp.float32),
        ],
        compiler_params=pltpu.CompilerParams(
            dimension_semantics=("parallel", "arbitrary"),
            vmem_limit_bytes=48 * 1024 * 1024),
    )(student, teacher, center)

    total_loss = jnp.sum(loss_partial)
    # TODO(synk): dist.all_reduce of batch_center omitted (world_size == 1).
    batch_center = jnp.sum(center_partial, axis=0) / float(2 * B)   # (1, D)
    new_center = (center.astype(jnp.float32) * center_momentum
                  + batch_center * (1.0 - center_momentum))
    return total_loss, new_center


def dino_loss_reference(student_output, teacher_output, center, temp, *,
                        ncrops, student_temp=0.1, center_momentum=0.9):
    B = teacher_output.shape[0] // 2
    D = teacher_output.shape[1]
    student = (student_output / student_temp).reshape(ncrops, B, D)
    teacher = jax.nn.softmax((teacher_output - center) / temp,
                             axis=-1).reshape(2, B, D)
    total = 0.0
    n_terms = 0
    for iq in range(2):
        for v in range(ncrops):
            if v == iq:
                continue
            log_p = jax.nn.log_softmax(student[v], axis=-1)
            total = total + jnp.sum(-teacher[iq] * log_p, axis=-1).mean()
            n_terms += 1
    total = total / n_terms
    batch_center = jnp.sum(teacher_output, axis=0, keepdims=True)
    batch_center = batch_center / teacher_output.shape[0]
    new_center = center * center_momentum + batch_center * (1.0 - center_momentum)
    return total, new_center


if __name__ == "__main__":
    # DINOLoss config (deterministic, synthetic, small).
    out_dim = 128
    ncrops = 4
    warmup_teacher_temp = 0.04
    teacher_temp = 0.07
    warmup_teacher_temp_epochs = 5
    nepochs = 10
    student_temp = 0.1
    center_momentum = 0.9
    B = 32   # samples per crop / per teacher view
    epoch = 3

    teacher_temp_schedule = jnp.concatenate((
        jnp.linspace(warmup_teacher_temp, teacher_temp,
                     warmup_teacher_temp_epochs),
        jnp.ones(nepochs - warmup_teacher_temp_epochs) * teacher_temp,
    ))
    temp = float(teacher_temp_schedule[epoch])

    key = jax.random.PRNGKey(0)
    k_s, k_t = jax.random.split(key)
    student_output = jax.random.normal(k_s, (ncrops * B, out_dim), jnp.float32)
    teacher_output = jax.random.normal(k_t, (2 * B, out_dim), jnp.float32)
    center = jnp.zeros((1, out_dim), jnp.float32)   # register_buffer init

    loss_ref, new_center_ref = dino_loss_reference(
        student_output, teacher_output, center, temp,
        ncrops=ncrops, student_temp=student_temp,
        center_momentum=center_momentum)

    # Grid path: tile_b=8 -> 4 row blocks -> grid (2, 2): exercises the
    # megacore split and the multi-step accumulator.
    loss, new_center = dino_loss_pallas(
        student_output, teacher_output, center, temp,
        ncrops=ncrops, student_temp=student_temp,
        center_momentum=center_momentum, tile_b=8)
    loss = jax.block_until_ready(loss)
    new_center = jax.block_until_ready(new_center)
    assert jnp.allclose(loss, loss_ref, rtol=2e-5, atol=2e-5), (loss, loss_ref)
    assert jnp.allclose(new_center, new_center_ref, rtol=2e-5, atol=2e-5)

    # Auto-tiled path (single row block) should match too.
    loss2, new_center2 = dino_loss_pallas(
        student_output, teacher_output, center, temp,
        ncrops=ncrops, student_temp=student_temp,
        center_momentum=center_momentum)
    loss2 = jax.block_until_ready(loss2)
    new_center2 = jax.block_until_ready(new_center2)
    assert jnp.allclose(loss2, loss_ref, rtol=2e-5, atol=2e-5), (loss2, loss_ref)
    assert jnp.allclose(new_center2, new_center_ref, rtol=2e-5, atol=2e-5)

    print("KERNEL_OK")
</pallas_src>

<mosaic_0001>
module attributes {stable_mosaic.version = 11 : i64} {
  func.func @kernel(%arg0: i32, %arg1: i32, %arg2: memref<4x8x128xf32, #tpu.memory_space<vmem>>, %arg3: memref<2x8x128xf32, #tpu.memory_space<vmem>>, %arg4: memref<1x128xf32, #tpu.memory_space<vmem>>, %arg5: memref<1x1x1xf32, #tpu.memory_space<vmem>>, %arg6: memref<1x1x128xf32, #tpu.memory_space<vmem>>) attributes {dimension_semantics = [#tpu.dimension_semantics<parallel>, #tpu.dimension_semantics<arbitrary>], iteration_bounds = array<i64: 2, 2>, scalar_prefetch = 0 : i64, scratch_operands = 0 : i64, tpu.core_type = #tpu.core_type<tc>, window_params = [{transform_indices = @transform_0, window_bounds = array<i64: 4, 8, 128>}, {transform_indices = @transform_1, window_bounds = array<i64: 2, 8, 128>}, {pipeline_mode = #tpu.pipeline_mode<synchronous>, transform_indices = @transform_2, window_bounds = array<i64: 1, 128>}, {transform_indices = @transform_3, window_bounds = array<i64: 1, 1, 1>}, {transform_indices = @transform_4, window_bounds = array<i64: 1, 1, 128>}]} {
    %c0_i32 = arith.constant 0 : i32
    %0 = arith.cmpi eq, %arg1, %c0_i32 : i32
    %1 = arith.extui %0 : i1 to i32
    %c0_i32_0 = arith.constant 0 : i32
    %2 = arith.cmpi ne, %1, %c0_i32_0 : i32
    scf.if %2 {
      %cst_36 = arith.constant 0.000000e+00 : f32
      %86 = vector.broadcast %cst_36 : f32 to vector<1x1x1xf32>
      %c0_37 = arith.constant 0 : index
      %c0_38 = arith.constant 0 : index
      %c0_39 = arith.constant 0 : index
      %87 = vector.load %arg5[%c0_37, %c0_38, %c0_39] : memref<1x1x1xf32, #tpu.memory_space<vmem>>, vector<1x1x1xf32>
      tpu.vector_store %arg5[%c0_37, %c0_38, %c0_39], %86 {strides = array<i32>} : memref<1x1x1xf32, #tpu.memory_space<vmem>>, vector<1x1x1xf32>,
      %cst_40 = arith.constant 0.000000e+00 : f32
      %88 = vector.broadcast %cst_40 : f32 to vector<1x1x128xf32>
      %c0_41 = arith.constant 0 : index
      %c0_42 = arith.constant 0 : index
      %c0_43 = arith.constant 0 : index
      %89 = vector.load %arg6[%c0_41, %c0_42, %c0_43] : memref<1x1x128xf32, #tpu.memory_space<vmem>>, vector<1x1x128xf32>
      tpu.vector_store %arg6[%c0_41, %c0_42, %c0_43], %88 {strides = array<i32>} : memref<1x1x128xf32, #tpu.memory_space<vmem>>, vector<1x1x128xf32>,
    } else {
    }
    %c0 = arith.constant 0 : index
    %c0_1 = arith.constant 0 : index
    %3 = vector.load %arg4[%c0, %c0_1] : memref<1x128xf32, #tpu.memory_space<vmem>>, vector<1x128xf32>
    %c0_2 = arith.constant 0 : index
    %c0_3 = arith.constant 0 : index
    %c0_4 = arith.constant 0 : index
    %4 = vector.load %arg3[%c0_2, %c0_3, %c0_4] : memref<2x8x128xf32, #tpu.memory_space<vmem>>, vector<2x8x128xf32>
    %c0_5 = arith.constant 0 : index
    %c0_6 = arith.constant 0 : index
    %c0_7 = arith.constant 0 : index
    %5 = vector.load %arg2[%c0_5, %c0_6, %c0_7] : memref<4x8x128xf32, #tpu.memory_space<vmem>>, vector<4x8x128xf32>
    %6 = vector.shape_cast %3 : vector<1x128xf32> to vector<1x1x128xf32>
    %7 = vector.broadcast %6 : vector<1x1x128xf32> to vector<2x8x128xf32>
    %8 = arith.subf %4, %7 : vector<2x8x128xf32>
    %cst = arith.constant 1.600000e+01 : f32
    %9 = vector.broadcast %cst : f32 to vector<2x8x128xf32>
    %10 = arith.mulf %8, %9 : vector<2x8x128xf32>
    %cst_8 = arith.constant dense<0xFF800000> : vector<2x8xf32>
    %11 = vector.multi_reduction <maximumf>, %10, %cst_8 [2] : vector<2x8x128xf32> to vector<2x8xf32>
    %12 = vector.shape_cast %11 : vector<2x8xf32> to vector<2x8x1xf32>
    %13 = vector.broadcast %12 : vector<2x8x1xf32> to vector<2x8x128xf32>
    %14 = arith.subf %10, %13 : vector<2x8x128xf32>
    %15 = math.exp %14 : vector<2x8x128xf32>
    %cst_9 = arith.constant dense<0.000000e+00> : vector<2x8xf32>
    %16 = vector.multi_reduction <add>, %15, %cst_9 [2] : vector<2x8x128xf32> to vector<2x8xf32>
    %17 = vector.shape_cast %16 : vector<2x8xf32> to vector<2x8x1xf32>
    %18 = tpu.reciprocal %17 : vector<2x8x1xf32> -> vector<2x8x1xf32>
    %19 = vector.broadcast %18 : vector<2x8x1xf32> to vector<2x8x128xf32>
    %20 = arith.mulf %15, %19 : vector<2x8x128xf32>
    %cst_10 = arith.constant dense<0xFF800000> : vector<4x8xf32>
    %21 = vector.multi_reduction <maximumf>, %5, %cst_10 [2] : vector<4x8x128xf32> to vector<4x8xf32>
    %22 = vector.shape_cast %21 : vector<4x8xf32> to vector<4x8x1xf32>
    %cst_11 = arith.constant 1.000000e+01 : f32
    %23 = vector.broadcast %cst_11 : f32 to vector<4x8x1xf32>
    %24 = arith.mulf %22, %23 : vector<4x8x1xf32>
    %cst_12 = arith.constant 1.000000e+01 : f32
    %25 = vector.broadcast %cst_12 : f32 to vector<4x8x128xf32>
    %26 = arith.mulf %5, %25 : vector<4x8x128xf32>
    %27 = vector.broadcast %24 : vector<4x8x1xf32> to vector<4x8x128xf32>
    %28 = arith.subf %26, %27 : vector<4x8x128xf32>
    %29 = math.exp %28 : vector<4x8x128xf32>
    %cst_13 = arith.constant dense<0.000000e+00> : vector<4x8xf32>
    %30 = vector.multi_reduction <add>, %29, %cst_13 [2] : vector<4x8x128xf32> to vector<4x8xf32>
    %31 = vector.shape_cast %30 : vector<4x8xf32> to vector<4x8x1xf32>
    %32 = math.log %31 : vector<4x8x1xf32>
    %33 = arith.addf %32, %24 : vector<4x8x1xf32>
    %34 = vector.extract_strided_slice %20 {offsets = [0, 0, 0], sizes = [1, 8, 128], strides = [1, 1, 1]} : vector<2x8x128xf32> to vector<1x8x128xf32>
    %35 = vector.shape_cast %34 : vector<1x8x128xf32> to vector<8x128xf32>
    %36 = vector.extract_strided_slice %20 {offsets = [1, 0, 0], sizes = [1, 8, 128], strides = [1, 1, 1]} : vector<2x8x128xf32> to vector<1x8x128xf32>
    %37 = vector.shape_cast %36 : vector<1x8x128xf32> to vector<8x128xf32>
    %38 = arith.addf %35, %37 : vector<8x128xf32>
    %cst_14 = arith.constant dense<0.000000e+00> : vector<8x128xf32>
    %39 = vector.multi_reduction <add>, %5, %cst_14 [0] : vector<4x8x128xf32> to vector<8x128xf32>
    %cst_15 = arith.constant dense<0.000000e+00> : vector<8x1xf32>
    %40 = vector.multi_reduction <add>, %33, %cst_15 [0] : vector<4x8x1xf32> to vector<8x1xf32>
    %41 = vector.extract_strided_slice %33 {offsets = [0, 0, 0], sizes = [1, 8, 1], strides = [1, 1, 1]} : vector<4x8x1xf32> to vector<1x8x1xf32>
    %42 = vector.shape_cast %41 : vector<1x8x1xf32> to vector<8x1xf32>
    %43 = vector.extract_strided_slice %33 {offsets = [1, 0, 0], sizes = [1, 8, 1], strides = [1, 1, 1]} : vector<4x8x1xf32> to vector<1x8x1xf32>
    %44 = vector.shape_cast %43 : vector<1x8x1xf32> to vector<8x1xf32>
    %45 = arith.addf %42, %44 : vector<8x1xf32>
    %46 = vector.extract_strided_slice %20 {offsets = [0, 0, 0], sizes = [1, 8, 128], strides = [1, 1, 1]} : vector<2x8x128xf32> to vector<1x8x128xf32>
    %47 = vector.shape_cast %46 : vector<1x8x128xf32> to vector<8x128xf32>
    %48 = vector.extract_strided_slice %5 {offsets = [0, 0, 0], sizes = [1, 8, 128], strides = [1, 1, 1]} : vector<4x8x128xf32> to vector<1x8x128xf32>
    %49 = vector.shape_cast %48 : vector<1x8x128xf32> to vector<8x128xf32>
    %50 = arith.mulf %47, %49 : vector<8x128xf32>
    %51 = vector.extract_strided_slice %20 {offsets = [1, 0, 0], sizes = [1, 8, 128], strides = [1, 1, 1]} : vector<2x8x128xf32> to vector<1x8x128xf32>
    %52 = vector.shape_cast %51 : vector<1x8x128xf32> to vector<8x128xf32>
    %53 = vector.extract_strided_slice %5 {offsets = [1, 0, 0], sizes = [1, 8, 128], strides = [1, 1, 1]} : vector<4x8x128xf32> to vector<1x8x128xf32>
    %54 = vector.shape_cast %53 : vector<1x8x128xf32> to vector<8x128xf32>
    %55 = arith.mulf %52, %54 : vector<8x128xf32>
    %56 = arith.addf %50, %55 : vector<8x128xf32>
    %57 = arith.mulf %38, %39 : vector<8x128xf32>
    %58 = arith.subf %56, %57 : vector<8x128xf32>
    %cst_16 = arith.constant 1.000000e+00 : f32
    %59 = vector.broadcast %cst_16 : f32 to vector<128x1xf32>
    %cst_17 = arith.constant dense<0.000000e+00> : vector<8x1xf32>
    %60 = tpu.matmul %58, %59, %cst_17 {dimension_numbers = #tpu.dot_dimension_numbers<[1], [0], [0], [1], [0, 0, 1, 1], [], []>} : vector<8x128xf32>, vector<128x1xf32>, vector<8x1xf32> -> vector<8x1xf32>
    %cst_18 = arith.constant 1.000000e+01 : f32
    %61 = vector.broadcast %cst_18 : f32 to vector<8x1xf32>
    %62 = arith.mulf %61, %60 : vector<8x1xf32>
    %cst_19 = arith.constant 2.000000e+00 : f32
    %63 = vector.broadcast %cst_19 : f32 to vector<8x1xf32>
    %64 = arith.mulf %63, %40 : vector<8x1xf32>
    %65 = arith.addf %62, %64 : vector<8x1xf32>
    %66 = arith.subf %65, %45 : vector<8x1xf32>
    %cst_20 = arith.constant dense<0.000000e+00> : vector<1xf32>
    %67 = vector.multi_reduction <add>, %66, %cst_20 [0] : vector<8x1xf32> to vector<1xf32>
    %68 = vector.shape_cast %67 : vector<1xf32> to vector<1x1xf32>
    %cst_21 = arith.constant 0.00520833349 : f32
    %69 = vector.broadcast %cst_21 : f32 to vector<1x1xf32>
    %70 = arith.mulf %68, %69 : vector<1x1xf32>
    %c0_22 = arith.constant 0 : index
    %c0_23 = arith.constant 0 : index
    %c0_24 = arith.constant 0 : index
    %71 = vector.load %arg5[%c0_22, %c0_23, %c0_24] : memref<1x1x1xf32, #tpu.memory_space<vmem>>, vector<1x1x1xf32>
    %72 = vector.shape_cast %70 : vector<1x1xf32> to vector<1x1x1xf32>
    %73 = arith.addf %71, %72 : vector<1x1x1xf32>
    %c0_25 = arith.constant 0 : index
    %c0_26 = arith.constant 0 : index
    %c0_27 = arith.constant 0 : index
    %74 = vector.load %arg5[%c0_25, %c0_26, %c0_27] : memref<1x1x1xf32, #tpu.memory_space<vmem>>, vector<1x1x1xf32>
    tpu.vector_store %arg5[%c0_25, %c0_26, %c0_27], %73 {strides = array<i32>} : memref<1x1x1xf32, #tpu.memory_space<vmem>>, vector<1x1x1xf32>,
    %cst_28 = arith.constant 1.000000e+00 : f32
    %75 = vector.broadcast %cst_28 : f32 to vector<1x8xf32>
    %76 = vector.extract_strided_slice %4 {offsets = [0, 0, 0], sizes = [1, 8, 128], strides = [1, 1, 1]} : vector<2x8x128xf32> to vector<1x8x128xf32>
    %77 = vector.shape_cast %76 : vector<1x8x128xf32> to vector<8x128xf32>
    %78 = vector.extract_strided_slice %4 {offsets = [1, 0, 0], sizes = [1, 8, 128], strides = [1, 1, 1]} : vector<2x8x128xf32> to vector<1x8x128xf32>
    %79 = vector.shape_cast %78 : vector<1x8x128xf32> to vector<8x128xf32>
    %80 = arith.addf %77, %79 : vector<8x128xf32>
    %c0_29 = arith.constant 0 : index
    %c0_30 = arith.constant 0 : index
    %c0_31 = arith.constant 0 : index
    %81 = vector.load %arg6[%c0_29, %c0_30, %c0_31] : memref<1x1x128xf32, #tpu.memory_space<vmem>>, vector<1x1x128xf32>
    %cst_32 = arith.constant dense<0.000000e+00> : vector<1x128xf32>
    %82 = tpu.matmul %75, %80, %cst_32 {dimension_numbers = #tpu.dot_dimension_numbers<[1], [0], [0], [1], [0, 0, 1, 1], [], []>} : vector<1x8xf32>, vector<8x128xf32>, vector<1x128xf32> -> vector<1x128xf32>
    %83 = vector.shape_cast %82 : vector<1x128xf32> to vector<1x1x128xf32>
    %84 = arith.addf %81, %83 : vector<1x1x128xf32>
    %c0_33 = arith.constant 0 : index
    %c0_34 = arith.constant 0 : index
    %c0_35 = arith.constant 0 : index
    %85 = vector.load %arg6[%c0_33, %c0_34, %c0_35] : memref<1x1x128xf32, #tpu.memory_space<vmem>>, vector<1x1x128xf32>
    tpu.vector_store %arg6[%c0_33, %c0_34, %c0_35], %84 {strides = array<i32>} : memref<1x1x128xf32, #tpu.memory_space<vmem>>, vector<1x1x128xf32>,
    return
  }
  func.func @transform_0(%arg0: i32, %arg1: i32) -> (i32, i32, i32) {
    %c2_i32 = arith.constant 2 : i32
    %0 = arith.muli %arg0, %c2_i32 : i32
    %1 = arith.addi %0, %arg1 : i32
    %c0_i32 = arith.constant 0 : i32
    %c0_i32_0 = arith.constant 0 : i32
    %c0_i32_1 = arith.constant 0 : i32
    return %c0_i32, %1, %c0_i32_0 : i32, i32, i32
  }
  func.func @transform_1(%arg0: i32, %arg1: i32) -> (i32, i32, i32) {
    %c2_i32 = arith.constant 2 : i32
    %0 = arith.muli %arg0, %c2_i32 : i32
    %1 = arith.addi %0, %arg1 : i32
    %c0_i32 = arith.constant 0 : i32
    %c0_i32_0 = arith.constant 0 : i32
    %c0_i32_1 = arith.constant 0 : i32
    return %c0_i32, %1, %c0_i32_0 : i32, i32, i32
  }
  func.func @transform_2(%arg0: i32, %arg1: i32) -> (i32, i32) {
    %c0_i32 = arith.constant 0 : i32
    %c0_i32_0 = arith.constant 0 : i32
    %c0_i32_1 = arith.constant 0 : i32
    return %c0_i32, %c0_i32_0 : i32, i32
  }
  func.func @transform_3(%arg0: i32, %arg1: i32) -> (i32, i32, i32) {
    %c0_i32 = arith.constant 0 : i32
    %c0_i32_0 = arith.constant 0 : i32
    %c0_i32_1 = arith.constant 0 : i32
    return %arg0, %c0_i32, %c0_i32_0 : i32, i32, i32
  }
  func.func @transform_4(%arg0: i32, %arg1: i32) -> (i32, i32, i32) {
    %c0_i32 = arith.constant 0 : i32
    %c0_i32_0 = arith.constant 0 : i32
    %c0_i32_1 = arith.constant 0 : i32
    return %arg0, %c0_i32, %c0_i32_0 : i32, i32, i32
  }
}

</mosaic_0001>

<llo_original>
// kernel: tpu_custom_call.1
$region0: #{tpu_custom_call.1}
  #allocation0 [shape = 'u32[]', space=smem, size = 0x4, offset = 0x4, fixed_abs, tag = 'smem constant byte address 0x4 - core index']
  #allocation1 [shape = 'u32[144,128]{1,0:T(1,128)}', space=vmem, size = 0x12000, scoped, tag = 'internal scratch']
  %s0 = inlined_call_operand.hbm [shape: f32[4,32,128], index: 0, kind: input, shape index: {}]
  %s1 = inlined_call_operand.hbm [shape: f32[2,32,128], index: 1, kind: input, shape index: {}]
  %s2 = inlined_call_operand.vmem [shape: f32[1,128], index: 2, kind: input, shape index: {}]
  %s3 = inlined_call_operand.vmem [shape: f32[2,1,1], index: 3, kind: output, shape index: {0}]
  %s4 = inlined_call_operand.hbm [shape: f32[2,1,128], index: 4, kind: output, shape index: {1}]
  %5 = xla_tuple %s3, %s4
  %s6 = sld [smem:[#allocation0]]
  $region65: #{tpu_custom_call.1} parent=0
    _
  %s8 = ssub.s32 1, %s6
  %s9 = scalar_select 0, %s8, %s6
  $region1: #{tpu_custom_call.1} parent=0
    #allocation2 [shape = 'u8[32768]{0}', space=vmem, size = 0x8000, scoped, tag = 'input window, operand 0']
    #allocation3 [shape = 's32[2]{0}', space=sflag, size = 0x8, scoped, tag = 'scoped memory for tpu_custom_call.1']
    #allocation4 [shape = 's32[2]{0}', space=sflag, size = 0x8, scoped, tag = 'scoped memory for tpu_custom_call.1']
    #allocation5 [shape = 'u8[16384]{0}', space=vmem, size = 0x4000, scoped, tag = 'input window, operand 1']
    #allocation6 [shape = 's32[2]{0}', space=sflag, size = 0x8, scoped, tag = 'scoped memory for tpu_custom_call.1']
    #allocation7 [shape = 'u8[1024]{0}', space=vmem, size = 0x400, scoped, tag = 'output window, operand 1']
    %10 = vsyncpa [#allocation3], 0
    %s11 = scalar_lea.sflag [#allocation3], 1
    %12 = vsyncpa %s11, 0
    %13 = vsyncpa [#allocation6], 0
    %s14 = scalar_lea.sflag [#allocation6], 1
    %15 = vsyncpa %s14, 0
    %16 = vsyncpa [#allocation4], 0
    %s17 = scalar_lea.sflag [#allocation4], 1
    %18 = vsyncpa %s17, 0
    loop: start=0, step=1, limit=6
    $region2: #{tpu_custom_call.1} parent=1 // loop_pre_header
      _
    $region3: #{tpu_custom_call.1} parent=1 // loop_header
      %s20 = sphi 0, %s24
      %p21 = scmp.ge.s32.totalorder %s20, 6
      %s27 = sphi 0, %s39
      %s28 = sphi 0, %s35
      %s29 = sphi 0, %s27
      %s30 = sphi 0, %s28
      %s31 = sphi 0, %s29
      %s32 = sphi 0, %s30
      %s46 = sphi 0, %s48
      %s49 = sphi 0, %s46
      %s50 = sphi 0, %s49
      %s66 = sphi 0, %s50
      %s76 = sphi 0, %s78
      %s79 = sphi 0, %s76
      %s80 = sphi 0, %s79
      %s96 = sphi 0, %s80
      %s100 = sphi 0, %s100
      %s102 = sphi 0, %s100
      %s103 = sphi 0, %s102
      %s117 = sphi 0, %s103
      %s123 = sphi 0, %s125
      %s126 = sphi 0, %s123
      %s127 = sphi 0, %s126
      %s143 = sphi 0, %s127
      %s149 = sphi 0, %s151
      %s152 = sphi 0, %s149
      %s153 = sphi 0, %s152
      %s169 = sphi 0, %s153
    $region4: #{tpu_custom_call.1} parent=1 // loop_header_branch
      %23 = sbr.rel (%p21) target = $region8
    $region5: #{tpu_custom_call.1} parent=1 // loop_body
      %s25 = ssub.s32 %s20, 1
      %s26 = ssub.s32 %s20, 2
      %s33 = sadd.s32 1, %s28
      %p34 = scmp.ge.s32.totalorder %s33, 2
      %s35 = scalar_select %p34, 0, %s33
      %s36 = sadd.s32 1, %s27
      %s37 = scalar_select %p34, %s36, %s27
      %p38 = scmp.ge.s32.totalorder %s37, 2
      %s39 = scalar_select %p38, 0, %s37
      %s40 = smul.u32 %s27, 2
      %s41 = sadd.s32 %s40, %s28
      %s42 = smul.u32 %s39, 2
      %s43 = sadd.s32 %s42, %s35
      %s44 = ssub.s32 %s41, %s43
      %p45 = scmp.eq.s32.totalorder %s44, 0
      %s47 = sadd.s32 %s46, 1
      %s48 = scalar_select %p45, %s46, %s47
      %p51 = pneg %p45
      %p52 = scmp.eq.s32.totalorder %s20, 3
      %p53 = por %p51, %p52
      %p54 = scmp.ne.s32.totalorder %s46, %s49
      %p55 = scmp.eq.s32.totalorder %s20, 0
      %p56 = por %p54, %p55
      %p57 = scmp.ne.s32.totalorder %s46, %s49
      %p58 = scmp.eq.s32.totalorder %s25, 3
      %p59 = por %p57, %p58
      %p60 = scmp.ne.s32.totalorder %s49, %s50
      %p61 = scmp.eq.s32.totalorder %s25, 0
      %p62 = por %p60, %p61
      %p63 = scmp.ne.s32.totalorder %s49, %s50
      %p64 = scmp.eq.s32.totalorder %s26, 3
      %p65 = por %p63, %p64
      %p67 = scmp.ne.s32.totalorder %s50, %s66
      %p68 = scmp.eq.s32.totalorder %s26, 0
      %p69 = por %p67, %p68
      %s70 = smul.u32 %s27, 2
      %s71 = sadd.s32 %s70, %s28
      %s72 = smul.u32 %s39, 2
      %s73 = sadd.s32 %s72, %s35
      %s74 = ssub.s32 %s71, %s73
      %p75 = scmp.eq.s32.totalorder %s74, 0
      %s77 = sadd.s32 %s76, 1
      %s78 = scalar_select %p75, %s76, %s77
      %p81 = pneg %p75
      %p82 = scmp.eq.s32.totalorder %s20, 3
      %p83 = por %p81, %p82
      %p84 = scmp.ne.s32.totalorder %s76, %s79
      %p85 = scmp.eq.s32.totalorder %s20, 0
      %p86 = por %p84, %p85
      %p87 = scmp.ne.s32.totalorder %s76, %s79
      %p88 = scmp.eq.s32.totalorder %s25, 3
      %p89 = por %p87, %p88
      %p90 = scmp.ne.s32.totalorder %s79, %s80
      %p91 = scmp.eq.s32.totalorder %s25, 0
      %p92 = por %p90, %p91
      %p93 = scmp.ne.s32.totalorder %s79, %s80
      %p94 = scmp.eq.s32.totalorder %s26, 3
      %p95 = por %p93, %p94
      %p97 = scmp.ne.s32.totalorder %s80, %s96
      %p98 = scmp.eq.s32.totalorder %s26, 0
      %p99 = por %p97, %p98
      %s101 = sadd.s32 %s100, 1
      %p104 = scmp.eq.s32.totalorder %s20, 3
      %p105 = scmp.ne.s32.totalorder %s100, %s102
      %p106 = scmp.eq.s32.totalorder %s20, 0
      %p107 = por %p105, %p106
      %p108 = scmp.ne.s32.totalorder %s100, %s102
      %p109 = scmp.eq.s32.totalorder %s25, 3
      %p110 = por %p108, %p109
      %p111 = scmp.ne.s32.totalorder %s102, %s103
      %p112 = scmp.eq.s32.totalorder %s25, 0
      %p113 = por %p111, %p112
      %p114 = scmp.ne.s32.totalorder %s102, %s103
      %p115 = scmp.eq.s32.totalorder %s26, 3
      %p116 = por %p114, %p115
      %p118 = scmp.ne.s32.totalorder %s103, %s117
      %p119 = scmp.eq.s32.totalorder %s26, 0
      %p120 = por %p118, %p119
      %s121 = ssub.s32 %s27, %s39
      %p122 = scmp.eq.s32.totalorder %s121, 0
      %s124 = sadd.s32 %s123, 1
      %s125 = scalar_select %p122, %s123, %s124
      %p128 = pneg %p122
      %p129 = scmp.eq.s32.totalorder %s20, 3
      %p130 = por %p128, %p129
      %p131 = scmp.ne.s32.totalorder %s123, %s126
      %p132 = scmp.eq.s32.totalorder %s20, 0
      %p133 = por %p131, %p132
      %p134 = scmp.ne.s32.totalorder %s123, %s126
      %p135 = scmp.eq.s32.totalorder %s25, 3
      %p136 = por %p134, %p135
      %p137 = scmp.ne.s32.totalorder %s126, %s127
      %p138 = scmp.eq.s32.totalorder %s25, 0
      %p139 = por %p137, %p138
      %p140 = scmp.ne.s32.totalorder %s126, %s127
      %p141 = scmp.eq.s32.totalorder %s26, 3
      %p142 = por %p140, %p141
      %p144 = scmp.ne.s32.totalorder %s127, %s143
      %p145 = scmp.eq.s32.totalorder %s26, 0
      %p146 = por %p144, %p145
      %s147 = ssub.s32 %s27, %s39
      %p148 = scmp.eq.s32.totalorder %s147, 0
      %s150 = sadd.s32 %s149, 1
      %s151 = scalar_select %p148, %s149, %s150
      %p154 = pneg %p148
      %p155 = scmp.eq.s32.totalorder %s20, 3
      %p156 = por %p154, %p155
      %p157 = scmp.ne.s32.totalorder %s149, %s152
      %p158 = scmp.eq.s32.totalorder %s20, 0
      %p159 = por %p157, %p158
      %p160 = scmp.ne.s32.totalorder %s149, %s152
      %p161 = scmp.eq.s32.totalorder %s25, 3
      %p162 = por %p160, %p161
      %p163 = scmp.ne.s32.totalorder %s152, %s153
      %p164 = scmp.eq.s32.totalorder %s25, 0
      %p165 = por %p163, %p164
      %p166 = scmp.ne.s32.totalorder %s152, %s153
      %p167 = scmp.eq.s32.totalorder %s26, 3
      %p168 = por %p166, %p167
      %p170 = scmp.ne.s32.totalorder %s153, %s169
      %p171 = scmp.eq.s32.totalorder %s26, 0
      %p172 = por %p170, %p171
      %p173 = scmp.le.s32.totalorder 1, %s20
      %p174 = scmp.lt.s32.totalorder %s20, 5
      %p175 = pnand %p173, %p174
      %p176 = pneg %p175
      // Predicated region
      $region9: #{tpu_custom_call.1} parent=5 // pred_check
        _
      $region10: #{tpu_custom_call.1} parent=5 // pred_check_branch
        %178 = sbr.rel (%p175) target = $region12
      $region11: #{tpu_custom_call.1} parent=5 // pred_region
        %s179 = ssub.s32 %s20, 1
        // Predicated region
        $region13: #{tpu_custom_call.1} parent=11 // pred_check
          %p180 = pneg %p113
        $region14: #{tpu_custom_call.1} parent=11 // pred_check_branch
          %182 = sbr.rel (%p180) target = $region16
        $region15: #{tpu_custom_call.1} parent=11 // pred_region
          _
        $region16: #{tpu_custom_call.1} parent=11 // pred_fallthru
          _
      $region12: #{tpu_custom_call.1} parent=5 // pred_fallthru
        _
      %p183 = scmp.lt.s32.totalorder %s20, 4
      // Predicated region
      $region17: #{tpu_custom_call.1} parent=5 // pred_check
        %p184 = pneg %p183
      $region18: #{tpu_custom_call.1} parent=5 // pred_check_branch
        %186 = sbr.rel (%p184) target = $region20
      $region19: #{tpu_custom_call.1} parent=5 // pred_region
        // Predicated region
        $region21: #{tpu_custom_call.1} parent=19 // pred_check
          %p187 = pneg %p56
        $region22: #{tpu_custom_call.1} parent=19 // pred_check_branch
          %189 = sbr.rel (%p187) target = $region24
        $region23: #{tpu_custom_call.1} parent=19 // pred_region
          %s190 = sand.u32 %s46, 1
          %s191 = scalar_lea.sflag [#allocation3], %s190
          %s192 = sand.u32 %s46, 1
          %s193 = smul.addr %s192, 32
          %s194 = scalar_lea.vmem [#allocation2], %s193
          %s195 = smul.u32 %s27, 2
          %s196 = sadd.s32 %s195, %s28
          %s198 = ssub.s32 512, 512
          %199 = vsyncadd %s191, %s198
          %s200 = smul.addr %s196, 128
          %s201 = scalar_lea.hbm %s0, %s200
          %s202 = sshll.u32 %s194, 4
          %s203 = int_to_ptr.vmem [resolvable:$true] %s202
          %208 = dma.hbm_to_vmem [thread:$0]  %s201, 512, %s203, %s191, 512, 128, 8
        $region24: #{tpu_custom_call.1} parent=19 // pred_fallthru
          _
        // Predicated region
        $region25: #{tpu_custom_call.1} parent=19 // pred_check
          %p209 = pneg %p86
        $region26: #{tpu_custom_call.1} parent=19 // pred_check_branch
          %211 = sbr.rel (%p209) target = $region28
        $region27: #{tpu_custom_call.1} parent=19 // pred_region
          %s212 = sand.u32 %s76, 1
          %s213 = scalar_lea.sflag [#allocation6], %s212
          %s214 = sand.u32 %s76, 1
          %s215 = smul.addr %s214, 16
          %s216 = scalar_lea.vmem [#allocation5], %s215
          %s217 = smul.u32 %s27, 2
          %s218 = sadd.s32 %s217, %s28
          %s220 = ssub.s32 256, 256
          %221 = vsyncadd %s213, %s220
          %s222 = smul.addr %s218, 128
          %s223 = scalar_lea.hbm %s1, %s222
          %s224 = sshll.u32 %s216, 4
          %s225 = int_to_ptr.vmem [resolvable:$true] %s224
          %230 = dma.hbm_to_vmem [thread:$0]  %s223, 256, %s225, %s213, 512, 128, 8
        $region28: #{tpu_custom_call.1} parent=19 // pred_fallthru
          _
      $region20: #{tpu_custom_call.1} parent=5 // pred_fallthru
        _
      %p231 = scmp.le.s32.totalorder 1, %s20
      %p232 = scmp.lt.s32.totalorder %s20, 5
      %p233 = pnand %p231, %p232
      %p234 = pneg %p233
      // Predicated region
      $region29: #{tpu_custom_call.1} parent=5 // pred_check
        _
      $region30: #{tpu_custom_call.1} parent=5 // pred_check_branch
        %236 = sbr.rel (%p233) target = $region32
      $region31: #{tpu_custom_call.1} parent=5 // pred_region
        %s237 = ssub.s32 %s20, 1
        %s238 = sand.u32 %s49, 1
        %s239 = scalar_lea.sflag [#allocation3], %s238
        %s240 = sand.u32 %s49, 1
        %s241 = smul.addr %s240, 32
        %s242 = scalar_lea.vmem [#allocation2], %s241
        // Predicated region
        $region33: #{tpu_custom_call.1} parent=31 // pred_check
          %p243 = pneg %p62
        $region34: #{tpu_custom_call.1} parent=31 // pred_check_branch
          %245 = sbr.rel (%p243) target = $region36
        $region35: #{tpu_custom_call.1} parent=31 // pred_region
          %246 = dma.done %s239, 512
        $region36: #{tpu_custom_call.1} parent=31 // pred_fallthru
          _
        %s247 = sand.u32 %s79, 1
        %s248 = scalar_lea.sflag [#allocation6], %s247
        %s249 = sand.u32 %s79, 1
        %s250 = smul.addr %s249, 16
        %s251 = scalar_lea.vmem [#allocation5], %s250
        // Predicated region
        $region37: #{tpu_custom_call.1} parent=31 // pred_check
          %p252 = pneg %p92
        $region38: #{tpu_custom_call.1} parent=31 // pred_check_branch
          %254 = sbr.rel (%p252) target = $region40
        $region39: #{tpu_custom_call.1} parent=31 // pred_region
          %255 = dma.done %s248, 256
        $region40: #{tpu_custom_call.1} parent=31 // pred_fallthru
          _
        %s256 = sand.u32 %s49, 1
        %s257 = scalar_lea.sflag [#allocation3], %s256
        %s258 = sand.u32 %s49, 1
        %s259 = smul.addr %s258, 32
        %s260 = scalar_lea.vmem [#allocation2], %s259
        %p261 = pneg %p62
        %p262 = pneg %p59
        %s263 = sand.u32 %s79, 1
        %s264 = scalar_lea.sflag [#allocation6], %s263
        %s265 = sand.u32 %s79, 1
        %s266 = smul.addr %s265, 16
        %s267 = scalar_lea.vmem [#allocation5], %s266
        %p268 = pneg %p92
        %p269 = pneg %p89
        %p270 = pneg %p113
        %p271 = pneg %p110
        %p272 = pneg %p139
        %p273 = pneg %p136
        %p274 = scmp.lt.s32.totalorder %s29, 1
        %s275 = scalar_select %p274, %s29, 1
        %s276 = scalar_lea.vmem %s3, %s275
        %p277 = pneg %p165
        %p278 = pneg %p162
        %s279 = sand.u32 %s152, 1
        %s280 = scalar_lea.sflag [#allocation4], %s279
        %s281 = sand.u32 %s152, 1
        %s282 = scalar_lea.vmem [#allocation7], %s281
        %s283 = smul.u32 %s29, 2
        %s284 = sadd.s32 %s283, %s30
        %s285 = smul.u32 %s29, 2
        %s286 = sadd.s32 %s285, %s30
        %p287 = scmp.lt.s32.totalorder %s29, 1
        %s288 = scalar_select %p287, %s29, 1
        %s289 = scalar_lea.vmem %s3, %s288
        %p290 = scmp.eq.s32.totalorder %s30, 0
        // Predicated region
        $region41: #{tpu_custom_call.1} parent=31 // pred_check
          %p291 = pneg %p290
        $region42: #{tpu_custom_call.1} parent=31 // pred_check_branch
          %293 = sbr.rel (%p291) target = $region44
        $region43: #{tpu_custom_call.1} parent=31 // pred_region
          %vm294 = vcmask 0
          %295 = vst.msk [vmem:[%s289] sm:$0x1] %vm294, 0.0
          %296 = vst [vmem:[%s282] sm:$0x1] 0.0
        $region44: #{tpu_custom_call.1} parent=31 // pred_fallthru
          _
        %v297 = vld [vmem:[%s2] sm:$0x1]
        %v298 = vld [vmem:[%s251] sm:$0xff]
        %v299 = vld [vmem:[%s251 + $0x8] sm:$0xff]
        %v300 = vld [vmem:[%s242] sm:$0xff]
        %v301 = vld [vmem:[%s242 + $0x8] sm:$0xff]
        %v302 = vld [vmem:[%s242 + $0x10] sm:$0xff]
        %v303 = vld [vmem:[%s242 + $0x18] sm:$0xff]
        %v305 = vlaneseq
        %v306 = vshrl.u32 %v305, 7
        %v307 = vsub.s32 0, %v306
        %v308 = vrot.slane %v297, %v307
        %v310 = vsub.f32 %v298, %v308
        %v311 = vsub.f32 %v299, %v308
        %v312 = vmul.f32 %v310, 16.0
        %v313 = vmul.f32 %v311, 16.0
        %314 = vmax.xlane.f32.xlu0 %v312
        %v315 = vpop.xlane.xlu0 %314
        %316 = vmax.xlane.f32.xlu0 %v313
        %v317 = vpop.xlane.xlu0 %316
        %v318 = vsub.f32 %v312, %v315
        %v319 = vsub.f32 %v313, %v317
        %v320 = vmul.f32 %v318, 1.442695
        %v321 = vpow.pop %v320
        %v322 = vmul.f32 %v319, 1.442695
        %v323 = vpow.pop %v322
        %324 = vadd.xlane.f32.xlu0 %v321
        %v325 = vpop.xlane.xlu0 %324
        %326 = vadd.xlane.f32.xlu0 %v323
        %v327 = vpop.xlane.xlu0 %326
        %v328 = vrcp.pop %v325
        %v329 = vrcp.pop %v327
        %v330 = vmul.f32 %v321, %v328
        %v331 = vmul.f32 %v323, %v329
        %332 = vmax.xlane.f32.xlu0 %v300
        %v333 = vpop.xlane.xlu0 %332
        %334 = vmax.xlane.f32.xlu0 %v301
        %v335 = vpop.xlane.xlu0 %334
        %336 = vmax.xlane.f32.xlu0 %v302
        %v337 = vpop.xlane.xlu0 %336
        %338 = vmax.xlane.f32.xlu0 %v303
        %v339 = vpop.xlane.xlu0 %338
        %v340 = vmul.f32 %v333, 10.0
        %v341 = vmul.f32 %v335, 10.0
        %v342 = vmul.f32 %v337, 10.0
        %v343 = vmul.f32 %v339, 10.0
        %v344 = vmul.f32 %v300, 10.0
        %v345 = vmul.f32 %v301, 10.0
        %v346 = vmul.f32 %v302, 10.0
        %v347 = vmul.f32 %v303, 10.0
        %v348 = vsub.f32 %v344, %v340
        %v349 = vsub.f32 %v345, %v341
        %v350 = vsub.f32 %v346, %v342
        %v351 = vsub.f32 %v347, %v343
        %v352 = vmul.f32 %v348, 1.442695
        %v353 = vpow.pop %v352
        %v354 = vmul.f32 %v349, 1.442695
        %v355 = vpow.pop %v354
        %v356 = vmul.f32 %v350, 1.442695
        %v357 = vpow.pop %v356
        %v358 = vmul.f32 %v351, 1.442695
        %v359 = vpow.pop %v358
        %360 = vadd.xlane.f32.xlu0 %v353
        %v361 = vpop.xlane.xlu0 %360
        %362 = vadd.xlane.f32.xlu0 %v355
        %v363 = vpop.xlane.xlu0 %362
        %364 = vadd.xlane.f32.xlu0 %v357
        %v365 = vpop.xlane.xlu0 %364
        %366 = vadd.xlane.f32.xlu0 %v359
        %v367 = vpop.xlane.xlu0 %366
        %v368 = vlog2.pop %v361
        %v369 = vmul.f32 %v368, 0.6931472
        %v370 = vlog2.pop %v363
        %v371 = vmul.f32 %v370, 0.6931472
        %v372 = vlog2.pop %v365
        %v373 = vmul.f32 %v372, 0.6931472
        %v374 = vlog2.pop %v367
        %v375 = vmul.f32 %v374, 0.6931472
        %v376 = vadd.f32 %v369, %v340
        %v377 = vadd.f32 %v371, %v341
        %v378 = vadd.f32 %v373, %v342
        %v379 = vadd.f32 %v375, %v343
        %v380 = vadd.f32 %v330, %v331
        %v381 = vadd.f32 %v300, %v301
        %v382 = vadd.f32 %v381, %v302
        %v383 = vadd.f32 %v382, %v303
        %v384 = vadd.f32 %v376, %v377
        %v385 = vadd.f32 %v384, %v378
        %v386 = vadd.f32 %v385, %v379
        %v387 = vmul.f32 %v330, %v300
        %v388 = vmul.f32 %v331, %v301
        %v389 = vadd.f32 %v387, %v388
        %v390 = vmul.f32 %v380, %v383
        %v391 = vsub.f32 %v389, %v390
        %392 = vmatprep.subr.mxu0 0.0
        %393 = vmatpush1.msra.mxu0 1.0
        %394 = vmatprep.subr.mxu0 0.0
        %395 = vmatpush1.msra.mxu0 1.0
        %396 = vmatprep.subr.mxu0 0.0
        %397 = vmatpush1.msra.mxu0 1.0
        %398 = vmatprep.subr.mxu0 0.0
        %399 = vmatpush1.msra.mxu0 1.0
        %400 = vmatprep.subr.mxu0 0.0
        %401 = vmatpush1.msra.mxu0 1.0
        %402 = vmatprep.subr.mxu0 0.0
        %403 = vmatpush1.msra.mxu0 1.0
        %404 = vmatprep.subr.mxu0 0.0
        %405 = vmatpush1.msra.mxu0 1.0
        %406 = vmatprep.subr.mxu0 0.0
        %407 = vmatpush1.msra.mxu0 1.0
        %408 = vmatprep.subr.mxu0 0.0
        %409 = vmatpush1.msra.mxu0 1.0
        %410 = vmatprep.subr.mxu0 0.0
        %411 = vmatpush1.msra.mxu0 1.0
        %412 = vmatprep.subr.mxu0 0.0
        %413 = vmatpush1.msra.mxu0 1.0
        %414 = vmatprep.subr.mxu0 0.0
        %415 = vmatpush1.msra.mxu0 1.0
        %416 = vmatprep.subr.mxu0 0.0
        %417 = vmatpush1.msra.mxu0 1.0
        %418 = vmatprep.subr.mxu0 0.0
        %419 = vmatpush1.msra.mxu0 1.0
        %420 = vmatprep.subr.mxu0 0.0
        %421 = vmatpush1.msra.mxu0 1.0
        %422 = vmatprep.subr.mxu0 0.0
        %423 = vmatpush1.msra.mxu0 1.0
        %424 = vmatprep.subr.mxu0 0.0
        %425 = vmatpush2.msra.mxu0 0.0
        %426 = vmatprep.subr.mxu0 0.0
        %427 = vmatpush2.msra.mxu0 0.0
        %428 = vmatprep.subr.mxu0 0.0
        %429 = vmatpush2.msra.mxu0 0.0
        %430 = vmatprep.subr.mxu0 0.0
        %431 = vmatpush2.msra.mxu0 0.0
        %432 = vmatprep.subr.mxu0 0.0
        %433 = vmatpush2.msra.mxu0 0.0
        %434 = vmatprep.subr.mxu0 0.0
        %435 = vmatpush2.msra.mxu0 0.0
        %436 = vmatprep.subr.mxu0 0.0
        %437 = vmatpush2.msra.mxu0 0.0
        %438 = vmatprep.subr.mxu0 0.0
        %439 = vmatpush2.msra.mxu0 0.0
        %440 = vmatprep.subr.mxu0 0.0
        %441 = vmatpush2.msra.mxu0 0.0
        %442 = vmatprep.subr.mxu0 0.0
        %443 = vmatpush2.msra.mxu0 0.0
        %444 = vmatprep.subr.mxu0 0.0
        %445 = vmatpush2.msra.mxu0 0.0
        %446 = vmatprep.subr.mxu0 0.0
        %447 = vmatpush2.msra.mxu0 0.0
        %448 = vmatprep.subr.mxu0 0.0
        %449 = vmatpush2.msra.mxu0 0.0
        %450 = vmatprep.subr.mxu0 0.0
        %451 = vmatpush2.msra.mxu0 0.0
        %452 = vmatprep.subr.mxu0 0.0
        %453 = vmatpush2.msra.mxu0 0.0
        %454 = vmatprep.subr.mxu0 0.0
        %455 = vmatpush2.msra.mxu0 0.0
        %456 = vmatprep.mubr.f32.mxu0 0.0
        %457 = vmatmul.mubr.f32.gmra.mxu0 %v391
        %v458 = vpop.f32.mrf.mxu0
        %v459 = vadd.f32 0.0, %v458
        %v460 = vpop.f32.mrf.mxu0
        %461 = vdwg.mxu0
        %v462 = vmul.f32 %v459, 10.0
        %v463 = vmul.f32 %v386, 2.0
        %v464 = vadd.f32 %v462, %v463
        %v465 = vsub.f32 %v464, %v384
        %vm466 = vcmask 7168
        %v467 = vsel %vm466, %v465, 0.0
        %v468 = vrot.slane %v467, 4
        %v469 = vadd.f32 %v467, %v468
        %v470 = vrot.slane %v469, 2
        %v471 = vadd.f32 %v469, %v470
        %v472 = vrot.slane %v471, 1
        %v473 = vadd.f32 %v471, %v472
        %v474 = vmul.f32 %v473, 0.0052083335
        %v475 = vld [vmem:[%s289] sm:$0x1]
        %v476 = vadd.f32 %v475, %v474
        %vm477 = vcmask 0
        %478 = vst.msk [vmem:[%s289] sm:$0x1] %vm477, %v476
        %v479 = vadd.f32 %v298, %v299
        %v480 = vld [vmem:[%s282] sm:$0x1]
        %vm481 = vcmask 64512
        %v483 = vsel %vm481, 1.0, 0
        %485 = vmatprep.subr.mxu0 0.0
        %486 = vmatpush1.msra.mxu0 0.0
        %487 = vmatprep.subr.mxu0 0.0
        %488 = vmatpush1.msra.mxu0 0.0
        %489 = vmatprep.subr.mxu0 0.0
        %490 = vmatpush1.msra.mxu0 0.0
        %491 = vmatprep.subr.mxu0 0.0
        %492 = vmatpush1.msra.mxu0 0.0
        %493 = vmatprep.subr.mxu0 0.0
        %494 = vmatpush1.msra.mxu0 0.0
        %495 = vmatprep.subr.mxu0 0.0
        %496 = vmatpush1.msra.mxu0 0.0
        %497 = vmatprep.subr.mxu0 0.0
        %498 = vmatpush1.msra.mxu0 0.0
        %499 = vmatprep.subr.mxu0 0.0
        %500 = vmatpush1.msra.mxu0 0.0
        %501 = vmatprep.subr.mxu0 0.0
        %502 = vmatpush1.msra.mxu0 0.0
        %503 = vmatprep.subr.mxu0 0.0
        %504 = vmatpush1.msra.mxu0 0.0
        %505 = vmatprep.subr.mxu0 0.0
        %506 = vmatpush1.msra.mxu0 0.0
        %507 = vmatprep.subr.mxu0 0.0
        %508 = vmatpush1.msra.mxu0 0.0
        %509 = vmatprep.subr.mxu0 0.0
        %510 = vmatpush1.msra.mxu0 0.0
        %511 = vmatprep.subr.mxu0 0.0
        %512 = vmatpush1.msra.mxu0 0.0
        %513 = vmatprep.subr.mxu0 0.0
        %514 = vmatpush1.msra.mxu0 0.0
        %515 = vmatprep.subr.mxu0 0.0
        %516 = vmatpush1.msra.mxu0 %v479
        %517 = vmatprep.subr.mxu0 0.0
        %518 = vmatpush2.msra.mxu0 0.0
        %519 = vmatprep.subr.mxu0 0.0
        %520 = vmatpush2.msra.mxu0 0.0
        %521 = vmatprep.subr.mxu0 0.0
        %522 = vmatpush2.msra.mxu0 0.0
        %523 = vmatprep.subr.mxu0 0.0
        %524 = vmatpush2.msra.mxu0 0.0
        %525 = vmatprep.subr.mxu0 0.0
        %526 = vmatpush2.msra.mxu0 0.0
        %527 = vmatprep.subr.mxu0 0.0
        %528 = vmatpush2.msra.mxu0 0.0
        %529 = vmatprep.subr.mxu0 0.0
        %530 = vmatpush2.msra.mxu0 0.0
        %531 = vmatprep.subr.mxu0 0.0
        %532 = vmatpush2.msra.mxu0 0.0
        %533 = vmatprep.subr.mxu0 0.0
        %534 = vmatpush2.msra.mxu0 0.0
        %535 = vmatprep.subr.mxu0 0.0
        %536 = vmatpush2.msra.mxu0 0.0
        %537 = vmatprep.subr.mxu0 0.0
        %538 = vmatpush2.msra.mxu0 0.0
        %539 = vmatprep.subr.mxu0 0.0
        %540 = vmatpush2.msra.mxu0 0.0
        %541 = vmatprep.subr.mxu0 0.0
        %542 = vmatpush2.msra.mxu0 0.0
        %543 = vmatprep.subr.mxu0 0.0
        %544 = vmatpush2.msra.mxu0 0.0
        %545 = vmatprep.subr.mxu0 0.0
        %546 = vmatpush2.msra.mxu0 0.0
        %547 = vmatprep.subr.mxu0 0.0
        %548 = vmatpush2.msra.mxu0 0.0
        %549 = vmatprep.mubr.f32.mxu0 0.0
        %550 = vmatmul.mubr.f32.gmra.mxu0 %v483
        %v551 = vpop.f32.mrf.mxu0
        %v552 = vadd.f32 0.0, %v551
        %v553 = vpop.f32.mrf.mxu0
        %554 = vdwg.mxu0
        %v555 = vadd.f32 %v480, %v552
        %556 = vst [vmem:[%s282] sm:$0x1] %v555
        %p557 = scmp.lt.s32.totalorder %s29, 1
        %s558 = scalar_select %p557, %s29, 1
        %s559 = scalar_lea.vmem %s3, %s558
        %s560 = sand.u32 %s152, 1
        %s561 = scalar_lea.sflag [#allocation4], %s560
        %s562 = sand.u32 %s152, 1
        %s563 = scalar_lea.vmem [#allocation7], %s562
        // Predicated region
        $region45: #{tpu_custom_call.1} parent=31 // pred_check
          %p564 = pneg %p136
        $region46: #{tpu_custom_call.1} parent=31 // pred_check_branch
          %566 = sbr.rel (%p564) target = $region48
        $region47: #{tpu_custom_call.1} parent=31 // pred_region
          _
        $region48: #{tpu_custom_call.1} parent=31 // pred_fallthru
          _
        // Predicated region
        $region49: #{tpu_custom_call.1} parent=31 // pred_check
          %p567 = pneg %p162
        $region50: #{tpu_custom_call.1} parent=31 // pred_check_branch
          %569 = sbr.rel (%p567) target = $region52
        $region51: #{tpu_custom_call.1} parent=31 // pred_region
          %s571 = ssub.s32 16, 16
          %572 = vsyncadd %s561, %s571
          %s573 = smul.addr %s29, 16
          %s574 = scalar_lea.hbm %s4, %s573
          %s576 = sshll.u32 %s563, 4
          %s577 = int_to_ptr.vmem [resolvable:$true] %s576
          %579 = dma.vmem_to_hbm [thread:$0]  %s577, 16, %s574, %s561
        $region52: #{tpu_custom_call.1} parent=31 // pred_fallthru
          _
      $region32: #{tpu_custom_call.1} parent=5 // pred_fallthru
        _
      %p580 = scmp.le.s32.totalorder 2, %s20
      // Predicated region
      $region53: #{tpu_custom_call.1} parent=5 // pred_check
        %p581 = pneg %p580
      $region54: #{tpu_custom_call.1} parent=5 // pred_check_branch
        %583 = sbr.rel (%p581) target = $region56
      $region55: #{tpu_custom_call.1} parent=5 // pred_region
        %s584 = ssub.s32 %s20, 2
        // Predicated region
        $region57: #{tpu_custom_call.1} parent=55 // pred_check
          %p585 = pneg %p142
        $region58: #{tpu_custom_call.1} parent=55 // pred_check_branch
          %587 = sbr.rel (%p585) target = $region60
        $region59: #{tpu_custom_call.1} parent=55 // pred_region
          %p588 = scmp.lt.s32.totalorder %s31, 1
          %s589 = scalar_select %p588, %s31, 1
          %s590 = scalar_lea.vmem %s3, %s589
        $region60: #{tpu_custom_call.1} parent=55 // pred_fallthru
          _
        // Predicated region
        $region61: #{tpu_custom_call.1} parent=55 // pred_check
          %p591 = pneg %p168
        $region62: #{tpu_custom_call.1} parent=55 // pred_check_branch
          %593 = sbr.rel (%p591) target = $region64
        $region63: #{tpu_custom_call.1} parent=55 // pred_region
          %s594 = sand.u32 %s153, 1
          %s595 = scalar_lea.sflag [#allocation4], %s594
          %s596 = sand.u32 %s153, 1
          %s597 = scalar_lea.vmem [#allocation7], %s596
          %598 = dma.done %s595, 16
        $region64: #{tpu_custom_call.1} parent=55 // pred_fallthru
          _
      $region56: #{tpu_custom_call.1} parent=5 // pred_fallthru
        _
    $region6: #{tpu_custom_call.1} parent=1 // loop_footer
      %s24 = sadd.s32 1, %s20
    $region7: #{tpu_custom_call.1} parent=1 // loop_footer_branch
      %19 = sbr.rel target = $region3
    $region8: #{tpu_custom_call.1} parent=1 // loop_exit
      _
    %599 = vsyncpa [#allocation3], 1
    %s600 = scalar_lea.sflag [#allocation3], 1
    %601 = vsyncpa %s600, 1
    %602 = vsyncpa [#allocation6], 1
    %s603 = scalar_lea.sflag [#allocation6], 1
    %604 = vsyncpa %s603, 1
    %605 = vsyncpa [#allocation4], 1
    %s606 = scalar_lea.sflag [#allocation4], 1
    %607 = vsyncpa %s606, 1

</llo_original>
